<compile_context>
chip_gen: v6e
topology: v6e:2x2x1
jax: 0.10.0
libtpu: 0.0.40
codegen_flags: <defaults>
</compile_context>

<pallas_src>
import jax
import jax.numpy as jnp
from jax.experimental import pallas as pl
from jax.experimental.pallas import tpu as pltpu


def _hsigmoid_kernel(x_ref, o_ref):
    x = x_ref[...]
    # relu6(x + 3) / 6  ==  clip(x + 3, 0, 6) * (1/6); weak-typed constants
    # keep the compute in the input dtype (no accidental f32 promotion).
    y = jnp.clip(x + 3.0, 0.0, 6.0) * (1.0 / 6.0)
    o_ref[...] = y.astype(o_ref.dtype)


def _round_up(a, b):
    return (a + b - 1) // b * b


def _round_down(a, b):
    return a // b * b


def hsigmoid(x, *, tile_bytes=2 * 1024 * 1024):
    orig_shape = x.shape
    dtype = x.dtype
    n = x.size
    if n == 0:
        return x

    itemsize = jnp.dtype(dtype).itemsize
    # sublane packing factor: 8 for 32-bit, 16 for 16-bit, 32 for 8-bit dtypes
    packing = 8 * max(1, 4 // itemsize)

    x_flat = x.reshape(-1)

    if n % 128 == 0:
        # Fast path: pure reshape, zero extra HBM copies. Prefer a wide lane
        # dim (unmasked vst, bigger DMAs).
        lane = 512 if n % 512 == 0 else (256 if n % 256 == 0 else 128)
        rows = n // lane
        pad_tail = 0
    else:
        # Rare odd-size path: pad flat vector by < 128 elements only.
        lane = 128
        pad_tail = _round_up(n, lane) - n
        x_flat = jnp.pad(x_flat, (0, pad_tail))
        rows = (n + pad_tail) // lane

    # ~tile_bytes per block, rounded to the packing factor; clamp for tiny
    # inputs. Ragged last block is fine (cdiv grid, masked OOB writes).
    target_rows = max(packing, _round_down(tile_bytes // (lane * itemsize), packing))
    tile_rows = min(target_rows, _round_up(rows, packing))
    grid = (pl.cdiv(rows, tile_rows),)

    out2d = pl.pallas_call(
        _hsigmoid_kernel,
        out_shape=jax.ShapeDtypeStruct((rows, lane), dtype),
        grid_spec=pltpu.PrefetchScalarGridSpec(
            num_scalar_prefetch=0,
            grid=grid,
            in_specs=[pl.BlockSpec((tile_rows, lane), lambda i: (i, 0))],
            out_specs=pl.BlockSpec((tile_rows, lane), lambda i: (i, 0)),
        ),
        # "parallel" is a no-op on single-TC chips and lets the compiler shard
        # the axis across TensorCores where supported (v7x megacore).
        compiler_params=pltpu.CompilerParams(
            dimension_semantics=("parallel",),
        ),
    )(x_flat.reshape(rows, lane))

    out_flat = out2d.reshape(-1)
    if pad_tail:
        out_flat = out_flat[:n]
    return out_flat.reshape(orig_shape)


def hsigmoid_ref(x):
    return jnp.clip(x + 3.0, 0.0, 6.0) / 6.0


if __name__ == "__main__":
    key = jax.random.PRNGKey(0)

    # NCHW input like the PyTorch module would see (fast path: 2048 % 512 == 0).
    x = jax.random.normal(key, (2, 4, 16, 16), dtype=jnp.float32) * 4.0
    y = hsigmoid(x)
    jax.block_until_ready(y)
    y_ref = hsigmoid_ref(x)
    assert y.shape == x.shape and y.dtype == x.dtype
    assert jnp.allclose(y, y_ref, atol=1e-6, rtol=1e-6)

    # Odd-sized input exercises the minimal-pad slow path.
    x_odd = jax.random.normal(jax.random.PRNGKey(1), (3, 5, 7, 11), dtype=jnp.float32) * 4.0
    y_odd = hsigmoid(x_odd)
    jax.block_until_ready(y_odd)
    assert y_odd.shape == x_odd.shape and y_odd.dtype == x_odd.dtype
    assert jnp.allclose(y_odd, hsigmoid_ref(x_odd), atol=1e-6, rtol=1e-6)

    print("KERNEL_OK")
</pallas_src>

<mosaic_0001>
module attributes {stable_mosaic.version = 11 : i64} {
  func.func @_hsigmoid_kernel(%arg0: i32, %arg1: memref<8x512xf32, #tpu.memory_space<vmem>>, %arg2: memref<8x512xf32, #tpu.memory_space<vmem>>) attributes {dimension_semantics = [#tpu.dimension_semantics<parallel>], iteration_bounds = array<i64: 1>, scalar_prefetch = 0 : i64, scratch_operands = 0 : i64, tpu.core_type = #tpu.core_type<tc>, window_params = [{transform_indices = @transform_0, window_bounds = array<i64: 8, 512>}, {transform_indices = @transform_1, window_bounds = array<i64: 8, 512>}]} {
    %c0 = arith.constant 0 : index
    %c0_0 = arith.constant 0 : index
    %0 = vector.load %arg1[%c0, %c0_0] : memref<8x512xf32, #tpu.memory_space<vmem>>, vector<8x512xf32>
    %cst = arith.constant 3.000000e+00 : f32
    %1 = vector.broadcast %cst : f32 to vector<8x512xf32>
    %2 = arith.addf %0, %1 : vector<8x512xf32>
    %cst_1 = arith.constant 0.000000e+00 : f32
    %cst_2 = arith.constant 6.000000e+00 : f32
    %3 = vector.broadcast %cst_1 : f32 to vector<8x512xf32>
    %4 = arith.maximumf %3, %2 : vector<8x512xf32>
    %5 = vector.broadcast %cst_2 : f32 to vector<8x512xf32>
    %6 = arith.minimumf %5, %4 : vector<8x512xf32>
    %cst_3 = arith.constant 0.166666672 : f32
    %7 = vector.broadcast %cst_3 : f32 to vector<8x512xf32>
    %8 = arith.mulf %6, %7 : vector<8x512xf32>
    %c0_4 = arith.constant 0 : index
    %c0_5 = arith.constant 0 : index
    %9 = vector.load %arg2[%c0_4, %c0_5] : memref<8x512xf32, #tpu.memory_space<vmem>>, vector<8x512xf32>
    tpu.vector_store %arg2[%c0_4, %c0_5], %8 {strides = array<i32>} : memref<8x512xf32, #tpu.memory_space<vmem>>, vector<8x512xf32>,
    return
  }
  func.func @transform_0(%arg0: i32) -> (i32, i32) {
    %c0_i32 = arith.constant 0 : i32
    %c0_i32_0 = arith.constant 0 : i32
    return %arg0, %c0_i32 : i32, i32
  }
  func.func @transform_1(%arg0: i32) -> (i32, i32) {
    %c0_i32 = arith.constant 0 : i32
    %c0_i32_0 = arith.constant 0 : i32
    return %arg0, %c0_i32 : i32, i32
  }
}

</mosaic_0001>

<llo_original>
// kernel: tpu_custom_call.1
$region0: #{tpu_custom_call.1}
  #allocation0 [shape = 'u32[]', space=smem, size = 0x4, offset = 0x4, fixed_abs, tag = 'smem constant byte address 0x4 - core index']
  #allocation1 [shape = 'u32[144,128]{1,0:T(1,128)}', space=vmem, size = 0x12000, scoped, tag = 'internal scratch']
  %s0 = inlined_call_operand.hbm [shape: f32[4,512], index: 0, kind: input, shape index: {}]
  %s1 = inlined_call_operand.hbm [shape: f32[4,512], index: 1, kind: output, shape index: {}]
  %s2 = sld [smem:[#allocation0]]
  $region18: #{tpu_custom_call.1} parent=0
    _
  %s4 = ssub.s32 1, %s2
  %s5 = scalar_select 0, %s4, %s2
  $region1: #{tpu_custom_call.1} parent=0
    #allocation2 [shape = 'u8[16384]{0}', space=vmem, size = 0x4000, scoped, tag = 'input window, operand 0, single buffered']
    #allocation3 [shape = 's32[1]{0}', space=sflag, size = 0x4, scoped, tag = 'scoped memory for tpu_custom_call.1']
    #allocation4 [shape = 's32[1]{0}', space=sflag, size = 0x4, scoped, tag = 'scoped memory for tpu_custom_call.1']
    #allocation5 [shape = 'u8[16384]{0}', space=vmem, size = 0x4000, scoped, tag = 'output window, operand 0, single buffered']
    %6 = vsyncpa [#allocation3], 0
    %7 = vsyncpa [#allocation4], 0
    // Predicated region
    $region2: #{tpu_custom_call.1} parent=1 // pred_check
      _
    $region3: #{tpu_custom_call.1} parent=1 // pred_check_branch
      %9 = sbr.rel (0) target = $region5
    $region4: #{tpu_custom_call.1} parent=1 // pred_region
      %s11 = ssub.s32 512, 256
      %12 = vsyncadd [#allocation3], %s11
      %s13 = sshll.u32 [#allocation2], 4
      %s14 = int_to_ptr.vmem [resolvable:$true] %s13
      %19 = dma.hbm_to_vmem [thread:$0]  %s0, 256, %s14, [#allocation3], 256, 256, 16
    $region5: #{tpu_custom_call.1} parent=1 // pred_fallthru
      _
    // Predicated region
    $region6: #{tpu_custom_call.1} parent=1 // pred_check
      _
    $region7: #{tpu_custom_call.1} parent=1 // pred_check_branch
      %21 = sbr.rel (0) target = $region9
    $region8: #{tpu_custom_call.1} parent=1 // pred_region
      %22 = dma.done [#allocation3], 512
    $region9: #{tpu_custom_call.1} parent=1 // pred_fallthru
      _
    %v23 = vld [vmem:[#allocation2] sm:$0xff]
    %v24 = vld [vmem:[#allocation2 + $0x8] sm:$0xff]
    %v25 = vld [vmem:[#allocation2 + $0x10] sm:$0xff]
    %v26 = vld [vmem:[#allocation2 + $0x18] sm:$0xff]
    %v27 = vadd.f32 %v23, 3.0
    %v28 = vadd.f32 %v24, 3.0
    %v29 = vadd.f32 %v25, 3.0
    %v30 = vadd.f32 %v26, 3.0
    %v31 = vmax.f32 %v27, 0.0
    %v32 = vmax.f32 %v28, 0.0
    %v33 = vmax.f32 %v29, 0.0
    %v34 = vmax.f32 %v30, 0.0
    %v35 = vmin.f32 %v31, 6.0
    %v36 = vmin.f32 %v32, 6.0
    %v37 = vmin.f32 %v33, 6.0
    %v38 = vmin.f32 %v34, 6.0
    %v39 = vmul.f32 %v35, 0.16666667
    %v40 = vmul.f32 %v36, 0.16666667
    %v41 = vmul.f32 %v37, 0.16666667
    %v42 = vmul.f32 %v38, 0.16666667
    %43 = vst [vmem:[#allocation5] sm:$0xff] %v39
    %44 = vst [vmem:[#allocation5 + $0x8] sm:$0xff] %v40
    %45 = vst [vmem:[#allocation5 + $0x10] sm:$0xff] %v41
    %46 = vst [vmem:[#allocation5 + $0x18] sm:$0xff] %v42
    // Predicated region
    $region10: #{tpu_custom_call.1} parent=1 // pred_check
      _
    $region11: #{tpu_custom_call.1} parent=1 // pred_check_branch
      %48 = sbr.rel (0) target = $region13
    $region12: #{tpu_custom_call.1} parent=1 // pred_region
      %s50 = ssub.s32 512, 256
      %51 = vsyncadd [#allocation4], %s50
      %s52 = sshll.u32 [#allocation5], 4
      %s53 = int_to_ptr.vmem [resolvable:$true] %s52
      %58 = dma.vmem_to_hbm [thread:$0]  %s53, 256, %s1, [#allocation4], 256, 256, 16
    $region13: #{tpu_custom_call.1} parent=1 // pred_fallthru
      _
    // Predicated region
    $region14: #{tpu_custom_call.1} parent=1 // pred_check
      _
    $region15: #{tpu_custom_call.1} parent=1 // pred_check_branch
      %60 = sbr.rel (0) target = $region17
    $region16: #{tpu_custom_call.1} parent=1 // pred_region
      %61 = dma.done [#allocation4], 512
    $region17: #{tpu_custom_call.1} parent=1 // pred_fallthru
      _
    %62 = vsyncpa [#allocation3], 1
    %63 = vsyncpa [#allocation4], 1

</llo_original>
